<compile_context>
chip_gen: v5e
topology: v5e:2x2
jax: 0.10.0
libtpu: 0.0.40
codegen_flags: <defaults>
</compile_context>

<pallas_src>
import functools

import jax
import jax.numpy as jnp
from jax.experimental import pallas as pl
from jax.experimental.pallas import tpu as pltpu


# ---------------------------------------------------------------------------
# Pallas kernel: 5 fused (Linear [+folded BN] [+ReLU]) layers per batch tile.
# ---------------------------------------------------------------------------
def _simsiam_fc_kernel(x_ref,
                       w1_ref, b1_ref,
                       w2_ref, b2_ref,
                       w3_ref, b3_ref,
                       w4_ref, b4_ref,
                       w5_ref, b5_ref,
                       z_ref, p_ref):
    """One (tile_n, C) pooled batch-row tile through the 5-layer FC chain."""
    x = x_ref[...]                                      # (tile_n, C) bf16

    def dense(h, w_ref):
        # bf16 LHS/RHS on the MXU, f32 accumulation.
        return jnp.dot(h.astype(w_ref.dtype), w_ref[...],
                       preferred_element_type=jnp.float32)

    # projection L1/L2: Linear + BN (folded) + ReLU
    h = jnp.maximum(dense(x, w1_ref) + b1_ref[...], 0.0)
    h = jnp.maximum(dense(h, w2_ref) + b2_ref[...], 0.0)
    # projection L3: Linear + BN (folded), no activation  -> z
    z = dense(h, w3_ref) + b3_ref[...]
    z_ref[...] = z.astype(z_ref.dtype)

    # predictor L4: Linear + BN (folded) + ReLU
    h = jnp.maximum(dense(z, w4_ref) + b4_ref[...], 0.0)
    # predictor L5: Linear (+bias), no norm / activation  -> p
    p = dense(h, w5_ref) + b5_ref[...]
    p_ref[...] = p.astype(p_ref.dtype)


# ---------------------------------------------------------------------------
# Wrapper helpers.
# ---------------------------------------------------------------------------
def _round_up(a, m):
    return (a + m - 1) // m * m


def _vmem_tile_bytes(shape, dtype):
    """Rough VMEM footprint of one buffer of `shape` with (8,128) tiling."""
    itemsize = jnp.dtype(dtype).itemsize
    sublane = 8 * max(4 // max(itemsize, 1), 1)
    if len(shape) == 0:
        return 4
    if len(shape) == 1:
        return _round_up(shape[0] * itemsize, 512)
    lead = 1
    for d in shape[:-2]:
        lead *= d
    return lead * _round_up(shape[-2], sublane) * _round_up(shape[-1], 128) * itemsize


def _vmem_capacity_bytes():
    """Per-TensorCore VMEM capacity, with a per-generation fallback."""
    try:
        cap = int(getattr(pltpu.get_tpu_info(), "vmem_capacity_bytes", 0))
        if cap > 0:
            return cap
    except Exception:
        pass
    try:
        kind = jax.devices()[0].device_kind.lower()
        if "v2" in kind or "v3" in kind:
            return 16 << 20
        if any(tag in kind for tag in ("v4", "v5", "v6")):
            return 128 << 20
    except Exception:
        pass
    return 64 << 20   # conservative default: v7x per-TensorCore VMEM


def _default_tile_target():
    """One full MXU M-tile: 128 on v5e, 256 on v6e / v7x."""
    try:
        kind = jax.devices()[0].device_kind.lower()
        if "v5e" in kind or "v5 lite" in kind or "v5litepod" in kind:
            return 128
    except Exception:
        pass
    return 256


# ---------------------------------------------------------------------------
# Forward wrapper.
# ---------------------------------------------------------------------------
def simsiam_head_forward(x_nchw, folded_params, *, tile_n=None,
                         single_buffer_weights=True, out_dtype=None,
                         x_kernel_dtype=jnp.bfloat16):
    """SimSiamHead.forward: returns (z, p) with shapes (N, proj_out), (N, pred_out)."""
    n, c_in, h, w = x_nchw.shape
    (w1, b1, w2, b2, w3, b3, w4, b4, w5, b5) = folded_params
    assert w1.shape[0] == c_in
    c1, c2, c3, c4, c5 = (w1.shape[1], w2.shape[1], w3.shape[1],
                          w4.shape[1], w5.shape[1])
    out_dtype = x_nchw.dtype if out_dtype is None else out_dtype

    # --- AdaptiveAvgPool2d((1,1)) + flatten(1): plain XLA reduce -----------
    # f32 accumulation for the mean, then stage the (N, C) slab in bf16 for
    # the FC kernel (C lands on the lane axis -> MXU-friendly, no relayout).
    pooled = jnp.mean(x_nchw.astype(jnp.float32), axis=(2, 3))      # (N, C)
    pooled = pooled.astype(x_kernel_dtype)

    # --- VMEM budgeting: weights first, then size the batch tile -----------
    vmem_cap = _vmem_capacity_bytes()
    weight_bufs = 1 if single_buffer_weights else 2
    weight_bytes = weight_bufs * sum(
        _vmem_tile_bytes(a.shape, a.dtype)
        for a in (w1, b1, w2, b2, w3, b3, w4, b4, w5, b5))
    headroom = 4 << 20
    tile_budget = max(vmem_cap - weight_bytes - headroom, 4 << 20)

    c_max = max(c_in, c1, c2, c3, c4, c5)

    def tile_footprint(tn):
        x_b = 2 * _vmem_tile_bytes((tn, c_in), x_kernel_dtype)      # 2x-buffered x
        o_b = 2 * (_vmem_tile_bytes((tn, c3), out_dtype)
                   + _vmem_tile_bytes((tn, c5), out_dtype))         # 2x-buffered z/p
        i_b = 4 * _vmem_tile_bytes((tn, c_max), jnp.float32)        # f32 intermediates
        return x_b + o_b + i_b

    if tile_n is None:
        tile_n = _default_tile_target()
    tile_n = max(8, min(_round_up(tile_n, 8), _round_up(n, 8)))
    if n > 8:
        # Keep >= 2 grid steps when the batch allows (v7x megacore sharding).
        tile_n = min(tile_n, max(8, _round_up(-(-n // 2), 8)))
    while tile_n > 8 and tile_footprint(tile_n) > tile_budget:
        tile_n -= 8

    # Pad the batch up to a tile multiple (instead of asserting divisibility).
    n_pad = _round_up(n, tile_n)
    if n_pad != n:
        pooled = jnp.pad(pooled, ((0, n_pad - n), (0, 0)))
    grid = (n_pad // tile_n,)

    def invariant_spec(shape):
        # Weights/biases never change across the grid; single-buffer them so
        # full-size bf16 weights are not duplicated in VMEM (64 MiB/TC v7x).
        if single_buffer_weights:
            return pl.BlockSpec(shape, lambda i: (0,) * len(shape),
                                pipeline_mode=pl.Buffered(1))
        return pl.BlockSpec(shape, lambda i: (0,) * len(shape))

    in_specs = [
        pl.BlockSpec((tile_n, c_in), lambda i: (i, 0)),             # pooled x tile
        invariant_spec(w1.shape), invariant_spec(b1.shape),
        invariant_spec(w2.shape), invariant_spec(b2.shape),
        invariant_spec(w3.shape), invariant_spec(b3.shape),
        invariant_spec(w4.shape), invariant_spec(b4.shape),
        invariant_spec(w5.shape), invariant_spec(b5.shape),
    ]
    out_specs = [
        pl.BlockSpec((tile_n, c3), lambda i: (i, 0)),               # z tile
        pl.BlockSpec((tile_n, c5), lambda i: (i, 0)),               # p tile
    ]
    out_shape = [
        jax.ShapeDtypeStruct((n_pad, c3), out_dtype),
        jax.ShapeDtypeStruct((n_pad, c5), out_dtype),
    ]

    # Explicit VMEM budget from the actual operand footprints, clamped to the
    # device capacity (64 MiB/TC on v7x, 128 MiB on v5e/v6e).
    vmem_limit = int(1.25 * (weight_bytes + tile_footprint(tile_n))) + (2 << 20)
    vmem_limit = max(vmem_limit, 16 << 20)
    vmem_limit = min(vmem_limit, int(0.9 * vmem_cap))

    z_pad, p_pad = pl.pallas_call(
        _simsiam_fc_kernel,
        grid_spec=pltpu.PrefetchScalarGridSpec(
            num_scalar_prefetch=0,
            grid=grid,
            in_specs=in_specs,
            out_specs=out_specs,
        ),
        out_shape=out_shape,
        compiler_params=pltpu.CompilerParams(
            # Batch tiles are independent -> parallel axis (v7x megacore).
            dimension_semantics=("parallel",),
            vmem_limit_bytes=vmem_limit,
        ),
    )(pooled, w1, b1, w2, b2, w3, b3, w4, b4, w5, b5)

    return z_pad[:n], p_pad[:n]


# ---------------------------------------------------------------------------
# Parameter construction (PyTorch layout) and BN folding.
# ---------------------------------------------------------------------------
def make_raw_params(key, in_channels, proj_mid, proj_out, pred_mid, pred_out,
                    dtype=jnp.float32):
    """Deterministic synthetic params: Linear W (out,in)/b (out,), BN (g,b,mean,var)."""
    keys = iter(jax.random.split(key, 64))

    def linear(cin, cout):
        w = jax.random.normal(next(keys), (cout, cin), dtype) / jnp.sqrt(
            jnp.asarray(cin, dtype))
        b = 0.1 * jax.random.normal(next(keys), (cout,), dtype)
        return w, b

    def bn(cout):
        gamma = 1.0 + 0.1 * jax.random.normal(next(keys), (cout,), dtype)
        beta = 0.1 * jax.random.normal(next(keys), (cout,), dtype)
        mean = 0.05 * jax.random.normal(next(keys), (cout,), dtype)
        var = jnp.abs(1.0 + 0.1 * jax.random.normal(next(keys), (cout,), dtype))
        return gamma, beta, mean, var

    return [
        (linear(in_channels, proj_mid), bn(proj_mid)),   # projection L1
        (linear(proj_mid, proj_mid), bn(proj_mid)),      # projection L2
        (linear(proj_mid, proj_out), bn(proj_out)),      # projection L3
        (linear(proj_out, pred_mid), bn(pred_mid)),      # predictor L4
        (linear(pred_mid, pred_out), None),              # predictor L5 (no BN)
    ]


def fold_params(raw_layers, *, eps=1e-5, weight_dtype=jnp.bfloat16):
    """Fold inference-mode BatchNorm1d into each Linear.

    BN(x @ W.T + b) = x @ (W.T * s) + (b * s + beta - mean * s),
    s = gamma / sqrt(var + eps).  Weights are stored (in, out) in bf16 (halves
    VMEM/HBM traffic, full-rate MXU); biases stay f32 for the VPU epilogue.
    NOTE: activations are truncated to bf16 before every matmul; this is a
    deliberate precision choice vs. the f32 PyTorch module.
    """
    folded = []
    for (wt_raw, b_raw), bn_p in raw_layers:
        wt = wt_raw.T.astype(jnp.float32)                # (in, out)
        bias = b_raw.astype(jnp.float32)
        if bn_p is not None:
            gamma, beta, mean, var = (a.astype(jnp.float32) for a in bn_p)
            s = gamma / jnp.sqrt(var + eps)
            wt = wt * s[None, :]
            bias = bias * s + beta - mean * s
        folded.append(wt.astype(weight_dtype))
        folded.append(bias.reshape(1, -1).astype(jnp.float32))
    return tuple(folded)


def _reference_forward(x_nchw, folded_params, out_dtype=None,
                       x_kernel_dtype=jnp.bfloat16):
    """Pure-JAX reference of the same (BN-folded, bf16-matmul) math."""
    (w1, b1, w2, b2, w3, b3, w4, b4, w5, b5) = folded_params
    out_dtype = x_nchw.dtype if out_dtype is None else out_dtype
    pooled = jnp.mean(x_nchw.astype(jnp.float32), axis=(2, 3)).astype(x_kernel_dtype)

    def dense(a, wt):
        return jnp.dot(a.astype(wt.dtype), wt, preferred_element_type=jnp.float32)

    h1 = jnp.maximum(dense(pooled, w1) + b1, 0.0)
    h2 = jnp.maximum(dense(h1, w2) + b2, 0.0)
    z = dense(h2, w3) + b3
    h3 = jnp.maximum(dense(z, w4) + b4, 0.0)
    p = dense(h3, w5) + b5
    return z.astype(out_dtype), p.astype(out_dtype)


if __name__ == "__main__":
    # Small shapes consistent with the module (real defaults scale these to
    # in_channels=2048, proj_mid=proj_out=2048, pred_mid=512, pred_out=2048).
    N, C_IN, H, W = 2, 64, 16, 16
    PROJ_MID, PROJ_OUT = 256, 256
    PRED_MID, PRED_OUT = 128, 256

    key = jax.random.PRNGKey(0)
    kx, kp = jax.random.split(key)
    x = jax.random.normal(kx, (N, C_IN, H, W), jnp.float32)   # NCHW, like PyTorch
    raw_params = make_raw_params(kp, C_IN, PROJ_MID, PROJ_OUT, PRED_MID, PRED_OUT)
    folded = fold_params(raw_params)

    def run(single_buffer_weights):
        fwd = jax.jit(functools.partial(
            simsiam_head_forward, single_buffer_weights=single_buffer_weights))
        out = fwd(x, folded)
        jax.block_until_ready(out)
        return out

    try:
        z, p = run(True)
    except (TypeError, ValueError, NotImplementedError, pltpu.LoweringException):
        # Fallback only for jax builds that reject pl.Buffered(1): identical
        # math, and the tile sizer re-budgets for double-buffered weights so
        # v7x's 64 MiB VMEM is not overshot.
        z, p = run(False)

    # Sanity check against a pure-JAX reference of the same folded/bf16 math.
    z_ref, p_ref = _reference_forward(x, folded)
    assert z.shape == (N, PROJ_OUT) and p.shape == (N, PRED_OUT)
    assert jnp.allclose(z.astype(jnp.float32), z_ref.astype(jnp.float32),
                        atol=1e-2, rtol=1e-2), float(
        jnp.max(jnp.abs(z.astype(jnp.float32) - z_ref.astype(jnp.float32))))
    assert jnp.allclose(p.astype(jnp.float32), p_ref.astype(jnp.float32),
                        atol=1e-2, rtol=1e-2), float(
        jnp.max(jnp.abs(p.astype(jnp.float32) - p_ref.astype(jnp.float32))))

    print("KERNEL_OK")
</pallas_src>

<mosaic_0001>
module attributes {stable_mosaic.version = 11 : i64} {
  func.func @_simsiam_fc_kernel(%arg0: i32, %arg1: memref<8x64xbf16, #tpu.memory_space<vmem>>, %arg2: memref<64x256xbf16, #tpu.memory_space<vmem>>, %arg3: memref<1x256xf32, #tpu.memory_space<vmem>>, %arg4: memref<256x256xbf16, #tpu.memory_space<vmem>>, %arg5: memref<1x256xf32, #tpu.memory_space<vmem>>, %arg6: memref<256x256xbf16, #tpu.memory_space<vmem>>, %arg7: memref<1x256xf32, #tpu.memory_space<vmem>>, %arg8: memref<256x128xbf16, #tpu.memory_space<vmem>>, %arg9: memref<1x128xf32, #tpu.memory_space<vmem>>, %arg10: memref<128x256xbf16, #tpu.memory_space<vmem>>, %arg11: memref<1x256xf32, #tpu.memory_space<vmem>>, %arg12: memref<8x256xf32, #tpu.memory_space<vmem>>, %arg13: memref<8x256xf32, #tpu.memory_space<vmem>>) attributes {dimension_semantics = [#tpu.dimension_semantics<parallel>], iteration_bounds = array<i64: 1>, scalar_prefetch = 0 : i64, scratch_operands = 0 : i64, tpu.core_type = #tpu.core_type<tc>, window_params = [{transform_indices = @transform_0, window_bounds = array<i64: 8, 64>}, {pipeline_mode = #tpu.pipeline_mode<synchronous>, transform_indices = @transform_1, window_bounds = array<i64: 64, 256>}, {pipeline_mode = #tpu.pipeline_mode<synchronous>, transform_indices = @transform_2, window_bounds = array<i64: 1, 256>}, {pipeline_mode = #tpu.pipeline_mode<synchronous>, transform_indices = @transform_3, window_bounds = array<i64: 256, 256>}, {pipeline_mode = #tpu.pipeline_mode<synchronous>, transform_indices = @transform_4, window_bounds = array<i64: 1, 256>}, {pipeline_mode = #tpu.pipeline_mode<synchronous>, transform_indices = @transform_5, window_bounds = array<i64: 256, 256>}, {pipeline_mode = #tpu.pipeline_mode<synchronous>, transform_indices = @transform_6, window_bounds = array<i64: 1, 256>}, {pipeline_mode = #tpu.pipeline_mode<synchronous>, transform_indices = @transform_7, window_bounds = array<i64: 256, 128>}, {pipeline_mode = #tpu.pipeline_mode<synchronous>, transform_indices = @transform_8, window_bounds = array<i64: 1, 128>}, {pipeline_mode = #tpu.pipeline_mode<synchronous>, transform_indices = @transform_9, window_bounds = array<i64: 128, 256>}, {pipeline_mode = #tpu.pipeline_mode<synchronous>, transform_indices = @transform_10, window_bounds = array<i64: 1, 256>}, {transform_indices = @transform_11, window_bounds = array<i64: 8, 256>}, {transform_indices = @transform_12, window_bounds = array<i64: 8, 256>}]} {
    %c0 = arith.constant 0 : index
    %c0_0 = arith.constant 0 : index
    %0 = vector.load %arg1[%c0, %c0_0] : memref<8x64xbf16, #tpu.memory_space<vmem>>, vector<8x64xbf16>
    %c0_1 = arith.constant 0 : index
    %c0_2 = arith.constant 0 : index
    %1 = vector.load %arg2[%c0_1, %c0_2] : memref<64x256xbf16, #tpu.memory_space<vmem>>, vector<64x256xbf16>
    %cst = arith.constant dense<0.000000e+00> : vector<8x256xf32>
    %2 = tpu.matmul %0, %1, %cst {dimension_numbers = #tpu.dot_dimension_numbers<[1], [0], [0], [1], [0, 0, 1, 1], [], []>} : vector<8x64xbf16>, vector<64x256xbf16>, vector<8x256xf32> -> vector<8x256xf32>
    %c0_3 = arith.constant 0 : index
    %c0_4 = arith.constant 0 : index
    %3 = vector.load %arg3[%c0_3, %c0_4] : memref<1x256xf32, #tpu.memory_space<vmem>>, vector<1x256xf32>
    %4 = vector.broadcast %3 : vector<1x256xf32> to vector<8x256xf32>
    %5 = arith.addf %2, %4 : vector<8x256xf32>
    %cst_5 = arith.constant 0.000000e+00 : f32
    %6 = vector.broadcast %cst_5 : f32 to vector<8x256xf32>
    %7 = arith.maximumf %5, %6 : vector<8x256xf32>
    %8 = arith.truncf %7 : vector<8x256xf32> to vector<8x256xbf16>
    %c0_6 = arith.constant 0 : index
    %c0_7 = arith.constant 0 : index
    %9 = vector.load %arg4[%c0_6, %c0_7] : memref<256x256xbf16, #tpu.memory_space<vmem>>, vector<256x256xbf16>
    %cst_8 = arith.constant dense<0.000000e+00> : vector<8x256xf32>
    %10 = tpu.matmul %8, %9, %cst_8 {dimension_numbers = #tpu.dot_dimension_numbers<[1], [0], [0], [1], [0, 0, 1, 1], [], []>} : vector<8x256xbf16>, vector<256x256xbf16>, vector<8x256xf32> -> vector<8x256xf32>
    %c0_9 = arith.constant 0 : index
    %c0_10 = arith.constant 0 : index
    %11 = vector.load %arg5[%c0_9, %c0_10] : memref<1x256xf32, #tpu.memory_space<vmem>>, vector<1x256xf32>
    %12 = vector.broadcast %11 : vector<1x256xf32> to vector<8x256xf32>
    %13 = arith.addf %10, %12 : vector<8x256xf32>
    %cst_11 = arith.constant 0.000000e+00 : f32
    %14 = vector.broadcast %cst_11 : f32 to vector<8x256xf32>
    %15 = arith.maximumf %13, %14 : vector<8x256xf32>
    %16 = arith.truncf %15 : vector<8x256xf32> to vector<8x256xbf16>
    %c0_12 = arith.constant 0 : index
    %c0_13 = arith.constant 0 : index
    %17 = vector.load %arg6[%c0_12, %c0_13] : memref<256x256xbf16, #tpu.memory_space<vmem>>, vector<256x256xbf16>
    %cst_14 = arith.constant dense<0.000000e+00> : vector<8x256xf32>
    %18 = tpu.matmul %16, %17, %cst_14 {dimension_numbers = #tpu.dot_dimension_numbers<[1], [0], [0], [1], [0, 0, 1, 1], [], []>} : vector<8x256xbf16>, vector<256x256xbf16>, vector<8x256xf32> -> vector<8x256xf32>
    %c0_15 = arith.constant 0 : index
    %c0_16 = arith.constant 0 : index
    %19 = vector.load %arg7[%c0_15, %c0_16] : memref<1x256xf32, #tpu.memory_space<vmem>>, vector<1x256xf32>
    %20 = vector.broadcast %19 : vector<1x256xf32> to vector<8x256xf32>
    %21 = arith.addf %18, %20 : vector<8x256xf32>
    %c0_17 = arith.constant 0 : index
    %c0_18 = arith.constant 0 : index
    %22 = vector.load %arg12[%c0_17, %c0_18] : memref<8x256xf32, #tpu.memory_space<vmem>>, vector<8x256xf32>
    tpu.vector_store %arg12[%c0_17, %c0_18], %21 {strides = array<i32>} : memref<8x256xf32, #tpu.memory_space<vmem>>, vector<8x256xf32>,
    %23 = arith.truncf %21 : vector<8x256xf32> to vector<8x256xbf16>
    %c0_19 = arith.constant 0 : index
    %c0_20 = arith.constant 0 : index
    %24 = vector.load %arg8[%c0_19, %c0_20] : memref<256x128xbf16, #tpu.memory_space<vmem>>, vector<256x128xbf16>
    %cst_21 = arith.constant dense<0.000000e+00> : vector<8x128xf32>
    %25 = tpu.matmul %23, %24, %cst_21 {dimension_numbers = #tpu.dot_dimension_numbers<[1], [0], [0], [1], [0, 0, 1, 1], [], []>} : vector<8x256xbf16>, vector<256x128xbf16>, vector<8x128xf32> -> vector<8x128xf32>
    %c0_22 = arith.constant 0 : index
    %c0_23 = arith.constant 0 : index
    %26 = vector.load %arg9[%c0_22, %c0_23] : memref<1x128xf32, #tpu.memory_space<vmem>>, vector<1x128xf32>
    %27 = vector.broadcast %26 : vector<1x128xf32> to vector<8x128xf32>
    %28 = arith.addf %25, %27 : vector<8x128xf32>
    %cst_24 = arith.constant 0.000000e+00 : f32
    %29 = vector.broadcast %cst_24 : f32 to vector<8x128xf32>
    %30 = arith.maximumf %28, %29 : vector<8x128xf32>
    %31 = arith.truncf %30 : vector<8x128xf32> to vector<8x128xbf16>
    %c0_25 = arith.constant 0 : index
    %c0_26 = arith.constant 0 : index
    %32 = vector.load %arg10[%c0_25, %c0_26] : memref<128x256xbf16, #tpu.memory_space<vmem>>, vector<128x256xbf16>
    %cst_27 = arith.constant dense<0.000000e+00> : vector<8x256xf32>
    %33 = tpu.matmul %31, %32, %cst_27 {dimension_numbers = #tpu.dot_dimension_numbers<[1], [0], [0], [1], [0, 0, 1, 1], [], []>} : vector<8x128xbf16>, vector<128x256xbf16>, vector<8x256xf32> -> vector<8x256xf32>
    %c0_28 = arith.constant 0 : index
    %c0_29 = arith.constant 0 : index
    %34 = vector.load %arg11[%c0_28, %c0_29] : memref<1x256xf32, #tpu.memory_space<vmem>>, vector<1x256xf32>
    %35 = vector.broadcast %34 : vector<1x256xf32> to vector<8x256xf32>
    %36 = arith.addf %33, %35 : vector<8x256xf32>
    %c0_30 = arith.constant 0 : index
    %c0_31 = arith.constant 0 : index
    %37 = vector.load %arg13[%c0_30, %c0_31] : memref<8x256xf32, #tpu.memory_space<vmem>>, vector<8x256xf32>
    tpu.vector_store %arg13[%c0_30, %c0_31], %36 {strides = array<i32>} : memref<8x256xf32, #tpu.memory_space<vmem>>, vector<8x256xf32>,
    return
  }
  func.func @transform_0(%arg0: i32) -> (i32, i32) {
    %c0_i32 = arith.constant 0 : i32
    %c0_i32_0 = arith.constant 0 : i32
    return %arg0, %c0_i32 : i32, i32
  }
  func.func @transform_1(%arg0: i32) -> (i32, i32) {
    %c0_i32 = arith.constant 0 : i32
    %c0_i32_0 = arith.constant 0 : i32
    %c0_i32_1 = arith.constant 0 : i32
    return %c0_i32, %c0_i32_0 : i32, i32
  }
  func.func @transform_2(%arg0: i32) -> (i32, i32) {
    %c0_i32 = arith.constant 0 : i32
    %c0_i32_0 = arith.constant 0 : i32
    %c0_i32_1 = arith.constant 0 : i32
    return %c0_i32, %c0_i32_0 : i32, i32
  }
  func.func @transform_3(%arg0: i32) -> (i32, i32) {
    %c0_i32 = arith.constant 0 : i32
    %c0_i32_0 = arith.constant 0 : i32
    %c0_i32_1 = arith.constant 0 : i32
    return %c0_i32, %c0_i32_0 : i32, i32
  }
  func.func @transform_4(%arg0: i32) -> (i32, i32) {
    %c0_i32 = arith.constant 0 : i32
    %c0_i32_0 = arith.constant 0 : i32
    %c0_i32_1 = arith.constant 0 : i32
    return %c0_i32, %c0_i32_0 : i32, i32
  }
  func.func @transform_5(%arg0: i32) -> (i32, i32) {
    %c0_i32 = arith.constant 0 : i32
    %c0_i32_0 = arith.constant 0 : i32
    %c0_i32_1 = arith.constant 0 : i32
    return %c0_i32, %c0_i32_0 : i32, i32
  }
  func.func @transform_6(%arg0: i32) -> (i32, i32) {
    %c0_i32 = arith.constant 0 : i32
    %c0_i32_0 = arith.constant 0 : i32
    %c0_i32_1 = arith.constant 0 : i32
    return %c0_i32, %c0_i32_0 : i32, i32
  }
  func.func @transform_7(%arg0: i32) -> (i32, i32) {
    %c0_i32 = arith.constant 0 : i32
    %c0_i32_0 = arith.constant 0 : i32
    %c0_i32_1 = arith.constant 0 : i32
    return %c0_i32, %c0_i32_0 : i32, i32
  }
  func.func @transform_8(%arg0: i32) -> (i32, i32) {
    %c0_i32 = arith.constant 0 : i32
    %c0_i32_0 = arith.constant 0 : i32
    %c0_i32_1 = arith.constant 0 : i32
    return %c0_i32, %c0_i32_0 : i32, i32
  }
  func.func @transform_9(%arg0: i32) -> (i32, i32) {
    %c0_i32 = arith.constant 0 : i32
    %c0_i32_0 = arith.constant 0 : i32
    %c0_i32_1 = arith.constant 0 : i32
    return %c0_i32, %c0_i32_0 : i32, i32
  }
  func.func @transform_10(%arg0: i32) -> (i32, i32) {
    %c0_i32 = arith.constant 0 : i32
    %c0_i32_0 = arith.constant 0 : i32
    %c0_i32_1 = arith.constant 0 : i32
    return %c0_i32, %c0_i32_0 : i32, i32
  }
  func.func @transform_11(%arg0: i32) -> (i32, i32) {
    %c0_i32 = arith.constant 0 : i32
    %c0_i32_0 = arith.constant 0 : i32
    return %arg0, %c0_i32 : i32, i32
  }
  func.func @transform_12(%arg0: i32) -> (i32, i32) {
    %c0_i32 = arith.constant 0 : i32
    %c0_i32_0 = arith.constant 0 : i32
    return %arg0, %c0_i32 : i32, i32
  }
}

</mosaic_0001>

<llo_original>
// kernel: simsiam_head_forward.1
$region0: #{simsiam_head_forward.1}
  #allocation0 [shape = 'u32[]', space=smem, size = 0x4, offset = 0x4, fixed_abs, tag = 'smem constant byte address 0x4 - core index']
  #allocation1 [shape = 'u32[72,128]{1,0:T(1,128)}', space=vmem, size = 0x9000, scoped, tag = 'internal scratch']
  %s0 = inlined_call_operand.vmem [shape: bf16[8,64], index: 0, kind: input, shape index: {}]
  %s1 = inlined_call_operand.hbm [shape: bf16[64,256], index: 1, kind: input, shape index: {}]
  %s2 = inlined_call_operand.vmem [shape: f32[1,256], index: 2, kind: input, shape index: {}]
  %s3 = inlined_call_operand.vmem [shape: bf16[256,256], index: 3, kind: input, shape index: {}]
  %s4 = inlined_call_operand.vmem [shape: f32[1,256], index: 4, kind: input, shape index: {}]
  %s5 = inlined_call_operand.vmem [shape: bf16[256,256], index: 5, kind: input, shape index: {}]
  %s6 = inlined_call_operand.vmem [shape: f32[1,256], index: 6, kind: input, shape index: {}]
  %s7 = inlined_call_operand.hbm [shape: bf16[256,128], index: 7, kind: input, shape index: {}]
  %s8 = inlined_call_operand.vmem [shape: f32[1,128], index: 8, kind: input, shape index: {}]
  %s9 = inlined_call_operand.hbm [shape: bf16[128,256], index: 9, kind: input, shape index: {}]
  %s10 = inlined_call_operand.vmem [shape: f32[1,256], index: 10, kind: input, shape index: {}]
  %s11 = inlined_call_operand.vmem [shape: f32[8,256], index: 11, kind: output, shape index: {0}]
  %s12 = inlined_call_operand.vmem [shape: f32[8,256], index: 12, kind: output, shape index: {1}]
  %13 = xla_tuple %s11, %s12
  %s14 = sld [smem:[#allocation0]]
  $region74: #{simsiam_head_forward.1} parent=0
    _
  %s16 = ssub.s32 1, %s14
  %s17 = scalar_select 0, %s16, %s14
  $region1: #{simsiam_head_forward.1} parent=0
    #allocation2 [shape = 'u8[32768]{0}', space=vmem, size = 0x8000, scoped, tag = 'input window, operand 1, single buffered']
    #allocation3 [shape = 's32[1]{0}', space=sflag, size = 0x4, scoped, tag = 'scoped memory for simsiam_head_forward.1']
    #allocation4 [shape = 'u8[65536]{0}', space=vmem, size = 0x10000, scoped, tag = 'input window, operand 7, single buffered']
    #allocation5 [shape = 's32[1]{0}', space=sflag, size = 0x4, scoped, tag = 'scoped memory for simsiam_head_forward.1']
    #allocation6 [shape = 'u8[65536]{0}', space=vmem, size = 0x10000, scoped, tag = 'input window, operand 9, single buffered']
    %18 = vsyncpa [#allocation3], 0
    %19 = vsyncpa [#allocation5], 0
    // Predicated region
    $region2: #{simsiam_head_forward.1} parent=1 // pred_check
      _
    $region3: #{simsiam_head_forward.1} parent=1 // pred_check_branch
      %21 = sbr.rel (0) target = $region5
    $region4: #{simsiam_head_forward.1} parent=1 // pred_region
      _
    $region5: #{simsiam_head_forward.1} parent=1 // pred_fallthru
      _
    // Predicated region
    $region6: #{simsiam_head_forward.1} parent=1 // pred_check
      _
    $region7: #{simsiam_head_forward.1} parent=1 // pred_check_branch
      %23 = sbr.rel (0) target = $region9
    $region8: #{simsiam_head_forward.1} parent=1 // pred_region
      %25 = vsyncadd [#allocation3], 0
      %s26 = sshll.u32 %s1, 4
      %s27 = int_to_ptr.hbm [resolvable:$true] %s26
      %s28 = sshll.u32 [#allocation2], 4
      %s29 = int_to_ptr.vmem [resolvable:$true] %s28
      %34 = dma.hbm_to_vmem [thread:$0]  %s27, 1024, %s29, [#allocation3], 128, 128, 8
    $region9: #{simsiam_head_forward.1} parent=1 // pred_fallthru
      _
    // Predicated region
    $region10: #{simsiam_head_forward.1} parent=1 // pred_check
      _
    $region11: #{simsiam_head_forward.1} parent=1 // pred_check_branch
      %36 = sbr.rel (0) target = $region13
    $region12: #{simsiam_head_forward.1} parent=1 // pred_region
      _
    $region13: #{simsiam_head_forward.1} parent=1 // pred_fallthru
      _
    // Predicated region
    $region14: #{simsiam_head_forward.1} parent=1 // pred_check
      _
    $region15: #{simsiam_head_forward.1} parent=1 // pred_check_branch
      %38 = sbr.rel (0) target = $region17
    $region16: #{simsiam_head_forward.1} parent=1 // pred_region
      _
    $region17: #{simsiam_head_forward.1} parent=1 // pred_fallthru
      _
    // Predicated region
    $region18: #{simsiam_head_forward.1} parent=1 // pred_check
      _
    $region19: #{simsiam_head_forward.1} parent=1 // pred_check_branch
      %40 = sbr.rel (0) target = $region21
    $region20: #{simsiam_head_forward.1} parent=1 // pred_region
      _
    $region21: #{simsiam_head_forward.1} parent=1 // pred_fallthru
      _
    // Predicated region
    $region22: #{simsiam_head_forward.1} parent=1 // pred_check
      _
    $region23: #{simsiam_head_forward.1} parent=1 // pred_check_branch
      %42 = sbr.rel (0) target = $region25
    $region24: #{simsiam_head_forward.1} parent=1 // pred_region
      _
    $region25: #{simsiam_head_forward.1} parent=1 // pred_fallthru
      _
    // Predicated region
    $region26: #{simsiam_head_forward.1} parent=1 // pred_check
      _
    $region27: #{simsiam_head_forward.1} parent=1 // pred_check_branch
      %44 = sbr.rel (0) target = $region29
    $region28: #{simsiam_head_forward.1} parent=1 // pred_region
      _
    $region29: #{simsiam_head_forward.1} parent=1 // pred_fallthru
      _
    // Predicated region
    $region30: #{simsiam_head_forward.1} parent=1 // pred_check
      _
    $region31: #{simsiam_head_forward.1} parent=1 // pred_check_branch
      %46 = sbr.rel (0) target = $region33
    $region32: #{simsiam_head_forward.1} parent=1 // pred_region
      %48 = vsyncadd [#allocation5], 0
      %s49 = sshll.u32 %s7, 4
      %s50 = int_to_ptr.hbm [resolvable:$true] %s49
      %s51 = sshll.u32 [#allocation4], 4
      %s52 = int_to_ptr.vmem [resolvable:$true] %s51
      %57 = dma.hbm_to_vmem [thread:$0]  %s50, 2048, %s52, [#allocation5], 64, 64, 4
    $region33: #{simsiam_head_forward.1} parent=1 // pred_fallthru
      _
    // Predicated region
    $region34: #{simsiam_head_forward.1} parent=1 // pred_check
      _
    $region35: #{simsiam_head_forward.1} parent=1 // pred_check_branch
      %59 = sbr.rel (0) target = $region37
    $region36: #{simsiam_head_forward.1} parent=1 // pred_region
      _
    $region37: #{simsiam_head_forward.1} parent=1 // pred_fallthru
      _
    // Predicated region
    $region38: #{simsiam_head_forward.1} parent=1 // pred_check
      _
    $region39: #{simsiam_head_forward.1} parent=1 // pred_check_branch
      %61 = sbr.rel (0) target = $region41
    $region40: #{simsiam_head_forward.1} parent=1 // pred_region
      %63 = vsyncadd [#allocation5], 0
      %s64 = sshll.u32 %s9, 4
      %s65 = int_to_ptr.hbm [resolvable:$true] %s64
      %s66 = sshll.u32 [#allocation6], 4
      %s67 = int_to_ptr.vmem [resolvable:$true] %s66
      %72 = dma.hbm_to_vmem [thread:$0]  %s65, 2048, %s67, [#allocation5], 128, 128, 8
    $region41: #{simsiam_head_forward.1} parent=1 // pred_fallthru
      _
    // Predicated region
    $region42: #{simsiam_head_forward.1} parent=1 // pred_check
      _
    $region43: #{simsiam_head_forward.1} parent=1 // pred_check_branch
      %74 = sbr.rel (0) target = $region45
    $region44: #{simsiam_head_forward.1} parent=1 // pred_region
      _
    $region45: #{simsiam_head_forward.1} parent=1 // pred_fallthru
      _
    // Predicated region
    $region46: #{simsiam_head_forward.1} parent=1 // pred_check
      _
    $region47: #{simsiam_head_forward.1} parent=1 // pred_check_branch
      %76 = sbr.rel (0) target = $region49
    $region48: #{simsiam_head_forward.1} parent=1 // pred_region
      %78 = dma.done [#allocation3], 1024
    $region49: #{simsiam_head_forward.1} parent=1 // pred_fallthru
      _
    // Predicated region
    $region50: #{simsiam_head_forward.1} parent=1 // pred_check
      _
    $region51: #{simsiam_head_forward.1} parent=1 // pred_check_branch
      %80 = sbr.rel (0) target = $region53
    $region52: #{simsiam_head_forward.1} parent=1 // pred_region
      %82 = dma.done [#allocation5], 2048
    $region53: #{simsiam_head_forward.1} parent=1 // pred_fallthru
      _
    // Predicated region
    $region54: #{simsiam_head_forward.1} parent=1 // pred_check
      _
    $region55: #{simsiam_head_forward.1} parent=1 // pred_check_branch
      %84 = sbr.rel (0) target = $region57
    $region56: #{simsiam_head_forward.1} parent=1 // pred_region
      %86 = dma.done [#allocation5], 2048
    $region57: #{simsiam_head_forward.1} parent=1 // pred_fallthru
      _
    %v88 = vld [vmem:[%s0] sm:$0xf]
    %v89 = vld [vmem:[#allocation2] sm:$0xff]
    %v90 = vld [vmem:[#allocation2 + $0x8] sm:$0xff]
    %v91 = vld [vmem:[#allocation2 + $0x10] sm:$0xff]
    %v92 = vld [vmem:[#allocation2 + $0x18] sm:$0xff]
    %v93 = vld [vmem:[#allocation2 + $0x20] sm:$0xff]
    %v94 = vld [vmem:[#allocation2 + $0x28] sm:$0xff]
    %v95 = vld [vmem:[#allocation2 + $0x30] sm:$0xff]
    %v96 = vld [vmem:[#allocation2 + $0x38] sm:$0xff]
    %v97 = vld [vmem:[%s2] sm:$0x3]
    %v99 = vperm.slane %v97, 0
    %v100 = vperm.slane %v97, 1
    %v111 = vunpack.c.l.b16 %v89
    %v112 = vunpack.c.h.b16 %v89
    %v113 = vunpack.c.l.b16 %v90
    %v114 = vunpack.c.h.b16 %v90
    %v115 = vunpack.c.l.b16 %v91
    %v116 = vunpack.c.h.b16 %v91
    %v117 = vunpack.c.l.b16 %v92
    %v118 = vunpack.c.h.b16 %v92
    %v119 = vunpack.c.l.b16 %v93
    %v120 = vunpack.c.h.b16 %v93
    %v121 = vunpack.c.l.b16 %v94
    %v122 = vunpack.c.h.b16 %v94
    %v123 = vunpack.c.l.b16 %v95
    %v124 = vunpack.c.h.b16 %v95
    %v125 = vunpack.c.l.b16 %v96
    %v126 = vunpack.c.h.b16 %v96
    %v127 = vpack.c.b16 %v113, %v111
    %v128 = vpack.c.b16 %v114, %v112
    %v129 = vpack.c.b16 %v117, %v115
    %v130 = vpack.c.b16 %v118, %v116
    %v131 = vpack.c.b16 %v121, %v119
    %v132 = vpack.c.b16 %v122, %v120
    %v133 = vpack.c.b16 %v125, %v123
    %v134 = vpack.c.b16 %v126, %v124
    %vm143 = vcmask 523264
    %v145 = vsel %vm143, %v88, 0
    %147 = vmatpush.bf16.msra.mxu0 0
    %148 = vmatpush.bf16.msra.mxu0 0
    %149 = vmatpush.bf16.msra.mxu0 0
    %150 = vmatpush.bf16.msra.mxu0 0
    %151 = vmatpush.bf16.msra.mxu0 %v133
    %152 = vmatpush.bf16.msra.mxu0 %v131
    %153 = vmatpush.bf16.msra.mxu0 %v129
    %154 = vmatpush.bf16.msra.mxu0 %v127
    %155 = vmatmul.bf16.gmra.mxu0 %v145
    %v156 = vpop.f32.mrf.mxu0
    %v157 = vadd.f32 %v99, %v156
    %v158 = vpop.f32.mrf.mxu0
    %159 = vdwg.mxu0
    %160 = vmatpush.bf16.msra.mxu0 0
    %161 = vmatpush.bf16.msra.mxu0 0
    %162 = vmatpush.bf16.msra.mxu0 0
    %163 = vmatpush.bf16.msra.mxu0 0
    %164 = vmatpush.bf16.msra.mxu0 %v134
    %165 = vmatpush.bf16.msra.mxu0 %v132
    %166 = vmatpush.bf16.msra.mxu0 %v130
    %167 = vmatpush.bf16.msra.mxu0 %v128
    %168 = vmatmul.bf16.gmra.mxu0 %v145
    %v169 = vpop.f32.mrf.mxu0
    %v170 = vadd.f32 %v100, %v169
    %v171 = vpop.f32.mrf.mxu0
    %172 = vdwg.mxu0
    %v173 = vmax.f32 %v157, 0.0
    %v174 = vmax.f32 %v170, 0.0
    %v175 = vpack.c.bf16 %v173, %v173
    %v176 = vpack.c.bf16 %v174, %v174
    %v177 = vld [vmem:[%s3] sm:$0xff]
    %v178 = vld [vmem:[%s3 + $0x8] sm:$0xff]
    %v179 = vld [vmem:[%s3 + $0x10] sm:$0xff]
    %v180 = vld [vmem:[%s3 + $0x18] sm:$0xff]
    %v181 = vld [vmem:[%s3 + $0x20] sm:$0xff]
    %v182 = vld [vmem:[%s3 + $0x28] sm:$0xff]
    %v183 = vld [vmem:[%s3 + $0x30] sm:$0xff]
    %v184 = vld [vmem:[%s3 + $0x38] sm:$0xff]
    %v185 = vld [vmem:[%s3 + $0x40] sm:$0xff]
    %v186 = vld [vmem:[%s3 + $0x48] sm:$0xff]
    %v187 = vld [vmem:[%s3 + $0x50] sm:$0xff]
    %v188 = vld [vmem:[%s3 + $0x58] sm:$0xff]
    %v189 = vld [vmem:[%s3 + $0x60] sm:$0xff]
    %v190 = vld [vmem:[%s3 + $0x68] sm:$0xff]
    %v191 = vld [vmem:[%s3 + $0x70] sm:$0xff]
    %v192 = vld [vmem:[%s3 + $0x78] sm:$0xff]
    %v193 = vld [vmem:[%s3 + $0x80] sm:$0xff]
    %v194 = vld [vmem:[%s3 + $0x88] sm:$0xff]
    %v195 = vld [vmem:[%s3 + $0x90] sm:$0xff]
    %v196 = vld [vmem:[%s3 + $0x98] sm:$0xff]
    %v197 = vld [vmem:[%s3 + $0xa0] sm:$0xff]
    %v198 = vld [vmem:[%s3 + $0xa8] sm:$0xff]
    %v199 = vld [vmem:[%s3 + $0xb0] sm:$0xff]
    %v200 = vld [vmem:[%s3 + $0xb8] sm:$0xff]
    %v201 = vld [vmem:[%s3 + $0xc0] sm:$0xff]
    %v202 = vld [vmem:[%s3 + $0xc8] sm:$0xff]
    %v203 = vld [vmem:[%s3 + $0xd0] sm:$0xff]
    %v204 = vld [vmem:[%s3 + $0xd8] sm:$0xff]
    %v205 = vld [vmem:[%s3 + $0xe0] sm:$0xff]
    %v206 = vld [vmem:[%s3 + $0xe8] sm:$0xff]
    %v207 = vld [vmem:[%s3 + $0xf0] sm:$0xff]
    %v208 = vld [vmem:[%s3 + $0xf8] sm:$0xff]
    %v209 = vld [vmem:[%s4] sm:$0x3]
    %v211 = vperm.slane %v209, 0
    %v212 = vperm.slane %v209, 1
    %v247 = vunpack.c.l.b16 %v177
    %v248 = vunpack.c.h.b16 %v177
    %v249 = vunpack.c.l.b16 %v178
    %v250 = vunpack.c.h.b16 %v178
    %v251 = vunpack.c.l.b16 %v179
    %v252 = vunpack.c.h.b16 %v179
    %v253 = vunpack.c.l.b16 %v180
    %v254 = vunpack.c.h.b16 %v180
    %v255 = vunpack.c.l.b16 %v181
    %v256 = vunpack.c.h.b16 %v181
    %v257 = vunpack.c.l.b16 %v182
    %v258 = vunpack.c.h.b16 %v182
    %v259 = vunpack.c.l.b16 %v183
    %v260 = vunpack.c.h.b16 %v183
    %v261 = vunpack.c.l.b16 %v184
    %v262 = vunpack.c.h.b16 %v184
    %v263 = vunpack.c.l.b16 %v185
    %v264 = vunpack.c.h.b16 %v185
    %v265 = vunpack.c.l.b16 %v186
    %v266 = vunpack.c.h.b16 %v186
    %v267 = vunpack.c.l.b16 %v187
    %v268 = vunpack.c.h.b16 %v187
    %v269 = vunpack.c.l.b16 %v188
    %v270 = vunpack.c.h.b16 %v188
    %v271 = vunpack.c.l.b16 %v189
    %v272 = vunpack.c.h.b16 %v189
    %v273 = vunpack.c.l.b16 %v190
    %v274 = vunpack.c.h.b16 %v190
    %v275 = vunpack.c.l.b16 %v191
    %v276 = vunpack.c.h.b16 %v191
    %v277 = vunpack.c.l.b16 %v192
    %v278 = vunpack.c.h.b16 %v192
    %v279 = vunpack.c.l.b16 %v193
    %v280 = vunpack.c.h.b16 %v193
    %v281 = vunpack.c.l.b16 %v194
    %v282 = vunpack.c.h.b16 %v194
    %v283 = vunpack.c.l.b16 %v195
    %v284 = vunpack.c.h.b16 %v195
    %v285 = vunpack.c.l.b16 %v196
    %v286 = vunpack.c.h.b16 %v196
    %v287 = vunpack.c.l.b16 %v197
    %v288 = vunpack.c.h.b16 %v197
    %v289 = vunpack.c.l.b16 %v198
    %v290 = vunpack.c.h.b16 %v198
    %v291 = vunpack.c.l.b16 %v199
    %v292 = vunpack.c.h.b16 %v199
    %v293 = vunpack.c.l.b16 %v200
    %v294 = vunpack.c.h.b16 %v200
    %v295 = vunpack.c.l.b16 %v201
    %v296 = vunpack.c.h.b16 %v201
    %v297 = vunpack.c.l.b16 %v202
    %v298 = vunpack.c.h.b16 %v202
    %v299 = vunpack.c.l.b16 %v203
    %v300 = vunpack.c.h.b16 %v203
    %v301 = vunpack.c.l.b16 %v204
    %v302 = vunpack.c.h.b16 %v204
    %v303 = vunpack.c.l.b16 %v205
    %v304 = vunpack.c.h.b16 %v205
    %v305 = vunpack.c.l.b16 %v206
    %v306 = vunpack.c.h.b16 %v206
    %v307 = vunpack.c.l.b16 %v207
    %v308 = vunpack.c.h.b16 %v207
    %v309 = vunpack.c.l.b16 %v208
    %v310 = vunpack.c.h.b16 %v208
    %v311 = vpack.c.b16 %v249, %v247
    %v312 = vpack.c.b16 %v250, %v248
    %v313 = vpack.c.b16 %v253, %v251
    %v314 = vpack.c.b16 %v254, %v252
    %v315 = vpack.c.b16 %v257, %v255
    %v316 = vpack.c.b16 %v258, %v256
    %v317 = vpack.c.b16 %v261, %v259
    %v318 = vpack.c.b16 %v262, %v260
    %v319 = vpack.c.b16 %v265, %v263
    %v320 = vpack.c.b16 %v266, %v264
    %v321 = vpack.c.b16 %v269, %v267
    %v322 = vpack.c.b16 %v270, %v268
    %v323 = vpack.c.b16 %v273, %v271
    %v324 = vpack.c.b16 %v274, %v272
    %v325 = vpack.c.b16 %v277, %v275
    %v326 = vpack.c.b16 %v278, %v276
    %v327 = vpack.c.b16 %v281, %v279
    %v328 = vpack.c.b16 %v282, %v280
    %v329 = vpack.c.b16 %v285, %v283
    %v330 = vpack.c.b16 %v286, %v284
    %v331 = vpack.c.b16 %v289, %v287
    %v332 = vpack.c.b16 %v290, %v288
    %v333 = vpack.c.b16 %v293, %v291
    %v334 = vpack.c.b16 %v294, %v292
    %v335 = vpack.c.b16 %v297, %v295
    %v336 = vpack.c.b16 %v298, %v296
    %v337 = vpack.c.b16 %v301, %v299
    %v338 = vpack.c.b16 %v302, %v300
    %v339 = vpack.c.b16 %v305, %v303
    %v340 = vpack.c.b16 %v306, %v304
    %v341 = vpack.c.b16 %v309, %v307
    %v342 = vpack.c.b16 %v310, %v308
    %375 = vmatpush.bf16.msra.mxu0 %v325
    %376 = vmatpush.bf16.msra.mxu0 %v323
    %377 = vmatpush.bf16.msra.mxu0 %v321
    %378 = vmatpush.bf16.msra.mxu0 %v319
    %379 = vmatpush.bf16.msra.mxu0 %v317
    %380 = vmatpush.bf16.msra.mxu0 %v315
    %381 = vmatpush.bf16.msra.mxu0 %v313
    %382 = vmatpush.bf16.msra.mxu0 %v311
    %383 = vmatmul.bf16.gmra.mxu0 %v175
    %v384 = vpop.f32.mrf.mxu0
    %v385 = vadd.f32 %v211, %v384
    %v386 = vpop.f32.mrf.mxu0
    %387 = vdwg.mxu0
    %388 = vmatpush.bf16.msra.mxu0 %v341
    %389 = vmatpush.bf16.msra.mxu0 %v339
    %390 = vmatpush.bf16.msra.mxu0 %v337
    %391 = vmatpush.bf16.msra.mxu0 %v335
    %392 = vmatpush.bf16.msra.mxu0 %v333
    %393 = vmatpush.bf16.msra.mxu0 %v331
    %394 = vmatpush.bf16.msra.mxu0 %v329
    %395 = vmatpush.bf16.msra.mxu0 %v327
    %396 = vmatmul.bf16.gmra.mxu0 %v176
    %v397 = vpop.f32.mrf.mxu0
    %v398 = vadd.f32 %v385, %v397
    %v399 = vpop.f32.mrf.mxu0
    %400 = vdwg.mxu0
    %401 = vmatpush.bf16.msra.mxu0 %v326
    %402 = vmatpush.bf16.msra.mxu0 %v324
    %403 = vmatpush.bf16.msra.mxu0 %v322
    %404 = vmatpush.bf16.msra.mxu0 %v320
    %405 = vmatpush.bf16.msra.mxu0 %v318
    %406 = vmatpush.bf16.msra.mxu0 %v316
    %407 = vmatpush.bf16.msra.mxu0 %v314
    %408 = vmatpush.bf16.msra.mxu0 %v312
    %409 = vmatmul.bf16.gmra.mxu0 %v175
    %v410 = vpop.f32.mrf.mxu0
    %v411 = vadd.f32 %v212, %v410
    %v412 = vpop.f32.mrf.mxu0
    %413 = vdwg.mxu0
    %414 = vmatpush.bf16.msra.mxu0 %v342
    %415 = vmatpush.bf16.msra.mxu0 %v340
    %416 = vmatpush.bf16.msra.mxu0 %v338
    %417 = vmatpush.bf16.msra.mxu0 %v336
    %418 = vmatpush.bf16.msra.mxu0 %v334
    %419 = vmatpush.bf16.msra.mxu0 %v332
    %420 = vmatpush.bf16.msra.mxu0 %v330
    %421 = vmatpush.bf16.msra.mxu0 %v328
    %422 = vmatmul.bf16.gmra.mxu0 %v176
    %v423 = vpop.f32.mrf.mxu0
    %v424 = vadd.f32 %v411, %v423
    %v425 = vpop.f32.mrf.mxu0
    %426 = vdwg.mxu0
    %v427 = vmax.f32 %v398, 0.0
    %v428 = vmax.f32 %v424, 0.0
    %v429 = vpack.c.bf16 %v427, %v427
    %v430 = vpack.c.bf16 %v428, %v428
    %v431 = vld [vmem:[%s5] sm:$0xff]
    %v432 = vld [vmem:[%s5 + $0x8] sm:$0xff]
    %v433 = vld [vmem:[%s5 + $0x10] sm:$0xff]
    %v434 = vld [vmem:[%s5 + $0x18] sm:$0xff]
    %v435 = vld [vmem:[%s5 + $0x20] sm:$0xff]
    %v436 = vld [vmem:[%s5 + $0x28] sm:$0xff]
    %v437 = vld [vmem:[%s5 + $0x30] sm:$0xff]
    %v438 = vld [vmem:[%s5 + $0x38] sm:$0xff]
    %v439 = vld [vmem:[%s5 + $0x40] sm:$0xff]
    %v440 = vld [vmem:[%s5 + $0x48] sm:$0xff]
    %v441 = vld [vmem:[%s5 + $0x50] sm:$0xff]
    %v442 = vld [vmem:[%s5 + $0x58] sm:$0xff]
    %v443 = vld [vmem:[%s5 + $0x60] sm:$0xff]
    %v444 = vld [vmem:[%s5 + $0x68] sm:$0xff]
    %v445 = vld [vmem:[%s5 + $0x70] sm:$0xff]
    %v446 = vld [vmem:[%s5 + $0x78] sm:$0xff]
    %v447 = vld [vmem:[%s5 + $0x80] sm:$0xff]
    %v448 = vld [vmem:[%s5 + $0x88] sm:$0xff]
    %v449 = vld [vmem:[%s5 + $0x90] sm:$0xff]
    %v450 = vld [vmem:[%s5 + $0x98] sm:$0xff]
    %v451 = vld [vmem:[%s5 + $0xa0] sm:$0xff]
    %v452 = vld [vmem:[%s5 + $0xa8] sm:$0xff]
    %v453 = vld [vmem:[%s5 + $0xb0] sm:$0xff]
    %v454 = vld [vmem:[%s5 + $0xb8] sm:$0xff]
    %v455 = vld [vmem:[%s5 + $0xc0] sm:$0xff]
    %v456 = vld [vmem:[%s5 + $0xc8] sm:$0xff]
    %v457 = vld [vmem:[%s5 + $0xd0] sm:$0xff]
    %v458 = vld [vmem:[%s5 + $0xd8] sm:$0xff]
    %v459 = vld [vmem:[%s5 + $0xe0] sm:$0xff]
    %v460 = vld [vmem:[%s5 + $0xe8] sm:$0xff]
    %v461 = vld [vmem:[%s5 + $0xf0] sm:$0xff]
    %v462 = vld [vmem:[%s5 + $0xf8] sm:$0xff]
    %v463 = vld [vmem:[%s6] sm:$0x3]
    %v465 = vperm.slane %v463, 0
    %v466 = vperm.slane %v463, 1
    %v501 = vunpack.c.l.b16 %v431
    %v502 = vunpack.c.h.b16 %v431
    %v503 = vunpack.c.l.b16 %v432
    %v504 = vunpack.c.h.b16 %v432
    %v505 = vunpack.c.l.b16 %v433
    %v506 = vunpack.c.h.b16 %v433
    %v507 = vunpack.c.l.b16 %v434
    %v508 = vunpack.c.h.b16 %v434
    %v509 = vunpack.c.l.b16 %v435
    %v510 = vunpack.c.h.b16 %v435
    %v511 = vunpack.c.l.b16 %v436
    %v512 = vunpack.c.h.b16 %v436
    %v513 = vunpack.c.l.b16 %v437
    %v514 = vunpack.c.h.b16 %v437
    %v515 = vunpack.c.l.b16 %v438
    %v516 = vunpack.c.h.b16 %v438
    %v517 = vunpack.c.l.b16 %v439
    %v518 = vunpack.c.h.b16 %v439
    %v519 = vunpack.c.l.b16 %v440
    %v520 = vunpack.c.h.b16 %v440
    %v521 = vunpack.c.l.b16 %v441
    %v522 = vunpack.c.h.b16 %v441
    %v523 = vunpack.c.l.b16 %v442
    %v524 = vunpack.c.h.b16 %v442
    %v525 = vunpack.c.l.b16 %v443
    %v526 = vunpack.c.h.b16 %v443
    %v527 = vunpack.c.l.b16 %v444
    %v528 = vunpack.c.h.b16 %v444
    %v529 = vunpack.c.l.b16 %v445
    %v530 = vunpack.c.h.b16 %v445
    %v531 = vunpack.c.l.b16 %v446
    %v532 = vunpack.c.h.b16 %v446
    %v533 = vunpack.c.l.b16 %v447
    %v534 = vunpack.c.h.b16 %v447
    %v535 = vunpack.c.l.b16 %v448
    %v536 = vunpack.c.h.b16 %v448
    %v537 = vunpack.c.l.b16 %v449
    %v538 = vunpack.c.h.b16 %v449
    %v539 = vunpack.c.l.b16 %v450
    %v540 = vunpack.c.h.b16 %v450
    %v541 = vunpack.c.l.b16 %v451
    %v542 = vunpack.c.h.b16 %v451
    %v543 = vunpack.c.l.b16 %v452
    %v544 = vunpack.c.h.b16 %v452
    %v545 = vunpack.c.l.b16 %v453
    %v546 = vunpack.c.h.b16 %v453
    %v547 = vunpack.c.l.b16 %v454
    %v548 = vunpack.c.h.b16 %v454
    %v549 = vunpack.c.l.b16 %v455
    %v550 = vunpack.c.h.b16 %v455
    %v551 = vunpack.c.l.b16 %v456
    %v552 = vunpack.c.h.b16 %v456
    %v553 = vunpack.c.l.b16 %v457
    %v554 = vunpack.c.h.b16 %v457
    %v555 = vunpack.c.l.b16 %v458
    %v556 = vunpack.c.h.b16 %v458
    %v557 = vunpack.c.l.b16 %v459
    %v558 = vunpack.c.h.b16 %v459
    %v559 = vunpack.c.l.b16 %v460
    %v560 = vunpack.c.h.b16 %v460
    %v561 = vunpack.c.l.b16 %v461
    %v562 = vunpack.c.h.b16 %v461
    %v563 = vunpack.c.l.b16 %v462
    %v564 = vunpack.c.h.b16 %v462
    %v565 = vpack.c.b16 %v503, %v501
    %v566 = vpack.c.b16 %v504, %v502
    %v567 = vpack.c.b16 %v507, %v505
    %v568 = vpack.c.b16 %v508, %v506
    %v569 = vpack.c.b16 %v511, %v509
    %v570 = vpack.c.b16 %v512, %v510
    %v571 = vpack.c.b16 %v515, %v513
    %v572 = vpack.c.b16 %v516, %v514
    %v573 = vpack.c.b16 %v519, %v517
    %v574 = vpack.c.b16 %v520, %v518
    %v575 = vpack.c.b16 %v523, %v521
    %v576 = vpack.c.b16 %v524, %v522
    %v577 = vpack.c.b16 %v527, %v525
    %v578 = vpack.c.b16 %v528, %v526
    %v579 = vpack.c.b16 %v531, %v529
    %v580 = vpack.c.b16 %v532, %v530
    %v581 = vpack.c.b16 %v535, %v533
    %v582 = vpack.c.b16 %v536, %v534
    %v583 = vpack.c.b16 %v539, %v537
    %v584 = vpack.c.b16 %v540, %v538
    %v585 = vpack.c.b16 %v543, %v541
    %v586 = vpack.c.b16 %v544, %v542
    %v587 = vpack.c.b16 %v547, %v545
    %v588 = vpack.c.b16 %v548, %v546
    %v589 = vpack.c.b16 %v551, %v549
    %v590 = vpack.c.b16 %v552, %v550
    %v591 = vpack.c.b16 %v555, %v553
    %v592 = vpack.c.b16 %v556, %v554
    %v593 = vpack.c.b16 %v559, %v557
    %v594 = vpack.c.b16 %v560, %v558
    %v595 = vpack.c.b16 %v563, %v561
    %v596 = vpack.c.b16 %v564, %v562
    %629 = vmatpush.bf16.msra.mxu0 %v579
    %630 = vmatpush.bf16.msra.mxu0 %v577
    %631 = vmatpush.bf16.msra.mxu0 %v575
    %632 = vmatpush.bf16.msra.mxu0 %v573
    %633 = vmatpush.bf16.msra.mxu0 %v571
    %634 = vmatpush.bf16.msra.mxu0 %v569
    %635 = vmatpush.bf16.msra.mxu0 %v567
    %636 = vmatpush.bf16.msra.mxu0 %v565
    %637 = vmatmul.bf16.gmra.mxu0 %v429
    %v638 = vpop.f32.mrf.mxu0
    %v639 = vadd.f32 %v465, %v638
    %v640 = vpop.f32.mrf.mxu0
    %641 = vdwg.mxu0
    %642 = vmatpush.bf16.msra.mxu0 %v595
    %643 = vmatpush.bf16.msra.mxu0 %v593
    %644 = vmatpush.bf16.msra.mxu0 %v591
    %645 = vmatpush.bf16.msra.mxu0 %v589
    %646 = vmatpush.bf16.msra.mxu0 %v587
    %647 = vmatpush.bf16.msra.mxu0 %v585
    %648 = vmatpush.bf16.msra.mxu0 %v583
    %649 = vmatpush.bf16.msra.mxu0 %v581
    %650 = vmatmul.bf16.gmra.mxu0 %v430
    %v651 = vpop.f32.mrf.mxu0
    %v652 = vadd.f32 %v639, %v651
    %v653 = vpop.f32.mrf.mxu0
    %654 = vdwg.mxu0
    %655 = vmatpush.bf16.msra.mxu0 %v580
    %656 = vmatpush.bf16.msra.mxu0 %v578
    %657 = vmatpush.bf16.msra.mxu0 %v576
    %658 = vmatpush.bf16.msra.mxu0 %v574
    %659 = vmatpush.bf16.msra.mxu0 %v572
    %660 = vmatpush.bf16.msra.mxu0 %v570
    %661 = vmatpush.bf16.msra.mxu0 %v568
    %662 = vmatpush.bf16.msra.mxu0 %v566
    %663 = vmatmul.bf16.gmra.mxu0 %v429
    %v664 = vpop.f32.mrf.mxu0
    %v665 = vadd.f32 %v466, %v664
    %v666 = vpop.f32.mrf.mxu0
    %667 = vdwg.mxu0
    %668 = vmatpush.bf16.msra.mxu0 %v596
    %669 = vmatpush.bf16.msra.mxu0 %v594
    %670 = vmatpush.bf16.msra.mxu0 %v592
    %671 = vmatpush.bf16.msra.mxu0 %v590
    %672 = vmatpush.bf16.msra.mxu0 %v588
    %673 = vmatpush.bf16.msra.mxu0 %v586
    %674 = vmatpush.bf16.msra.mxu0 %v584
    %675 = vmatpush.bf16.msra.mxu0 %v582
    %676 = vmatmul.bf16.gmra.mxu0 %v430
    %v677 = vpop.f32.mrf.mxu0
    %v678 = vadd.f32 %v665, %v677
    %v679 = vpop.f32.mrf.mxu0
    %680 = vdwg.mxu0
    %681 = vst [vmem:[%s11] sm:$0xff] %v652
    %682 = vst [vmem:[%s11 + $0x8] sm:$0xff] %v678
    %v683 = vpack.c.bf16 %v652, %v652
    %v684 = vpack.c.bf16 %v678, %v678
    %v685 = vld [vmem:[#allocation4] sm:$0xf]
    %v686 = vld [vmem:[#allocation4 + $0x4] sm:$0xf]
    %v687 = vld [vmem:[#allocation4 + $0x8] sm:$0xf]
    %v688 = vld [vmem:[#allocation4 + $0xc] sm:$0xf]
    %v689 = vld [vmem:[#allocation4 + $0x10] sm:$0xf]
    %v690 = vld [vmem:[#allocation4 + $0x14] sm:$0xf]
    %v691 = vld [vmem:[#allocation4 + $0x18] sm:$0xf]
    %v692 = vld [vmem:[#allocation4 + $0x1c] sm:$0xf]
    %v693 = vld [vmem:[#allocation4 + $0x20] sm:$0xf]
    %v694 = vld [vmem:[#allocation4 + $0x24] sm:$0xf]
    %v695 = vld [vmem:[#allocation4 + $0x28] sm:$0xf]
    %v696 = vld [vmem:[#allocation4 + $0x2c] sm:$0xf]
    %v697 = vld [vmem:[#allocation4 + $0x30] sm:$0xf]
    %v698 = vld [vmem:[#allocation4 + $0x34] sm:$0xf]
    %v699 = vld [vmem:[#allocation4 + $0x38] sm:$0xf]
    %v700 = vld [vmem:[#allocation4 + $0x3c] sm:$0xf]
    %v701 = vld [vmem:[#allocation4 + $0x40] sm:$0xf]
    %v702 = vld [vmem:[#allocation4 + $0x44] sm:$0xf]
    %v703 = vld [vmem:[#allocation4 + $0x48] sm:$0xf]
    %v704 = vld [vmem:[#allocation4 + $0x4c] sm:$0xf]
    %v705 = vld [vmem:[#allocation4 + $0x50] sm:$0xf]
    %v706 = vld [vmem:[#allocation4 + $0x54] sm:$0xf]
    %v707 = vld [vmem:[#allocation4 + $0x58] sm:$0xf]
    %v708 = vld [vmem:[#allocation4 + $0x5c] sm:$0xf]
    %v709 = vld [vmem:[#allocation4 + $0x60] sm:$0xf]
    %v710 = vld [vmem:[#allocation4 + $0x64] sm:$0xf]
    %v711 = vld [vmem:[#allocation4 + $0x68] sm:$0xf]
    %v712 = vld [vmem:[#allocation4 + $0x6c] sm:$0xf]
    %v713 = vld [vmem:[#allocation4 + $0x70] sm:$0xf]
    %v714 = vld [vmem:[#allocation4 + $0x74] sm:$0xf]
    %v715 = vld [vmem:[#allocation4 + $0x78] sm:$0xf]
    %v716 = vld [vmem:[#allocation4 + $0x7c] sm:$0xf]
    %v717 = vld [vmem:[%s8] sm:$0x1]
    %v719 = vperm.slane %v717, 0
    %v753 = vunpack.c.l.b16 %v685
    %v754 = vunpack.c.l.b16 %v686
    %v755 = vunpack.c.l.b16 %v687
    %v756 = vunpack.c.l.b16 %v688
    %v757 = vunpack.c.l.b16 %v689
    %v758 = vunpack.c.l.b16 %v690
    %v759 = vunpack.c.l.b16 %v691
    %v760 = vunpack.c.l.b16 %v692
    %v761 = vunpack.c.l.b16 %v693
    %v762 = vunpack.c.l.b16 %v694
    %v763 = vunpack.c.l.b16 %v695
    %v764 = vunpack.c.l.b16 %v696
    %v765 = vunpack.c.l.b16 %v697
    %v766 = vunpack.c.l.b16 %v698
    %v767 = vunpack.c.l.b16 %v699
    %v768 = vunpack.c.l.b16 %v700
    %v769 = vunpack.c.l.b16 %v701
    %v770 = vunpack.c.l.b16 %v702
    %v771 = vunpack.c.l.b16 %v703
    %v772 = vunpack.c.l.b16 %v704
    %v773 = vunpack.c.l.b16 %v705
    %v774 = vunpack.c.l.b16 %v706
    %v775 = vunpack.c.l.b16 %v707
    %v776 = vunpack.c.l.b16 %v708
    %v777 = vunpack.c.l.b16 %v709
    %v778 = vunpack.c.l.b16 %v710
    %v779 = vunpack.c.l.b16 %v711
    %v780 = vunpack.c.l.b16 %v712
    %v781 = vunpack.c.l.b16 %v713
    %v782 = vunpack.c.l.b16 %v714
    %v783 = vunpack.c.l.b16 %v715
    %v784 = vunpack.c.l.b16 %v716
    %v785 = vpack.c.b16 %v754, %v753
    %v786 = vpack.c.b16 %v756, %v755
    %v787 = vpack.c.b16 %v758, %v757
    %v788 = vpack.c.b16 %v760, %v759
    %v789 = vpack.c.b16 %v762, %v761
    %v790 = vpack.c.b16 %v764, %v763
    %v791 = vpack.c.b16 %v766, %v765
    %v792 = vpack.c.b16 %v768, %v767
    %v793 = vpack.c.b16 %v770, %v769
    %v794 = vpack.c.b16 %v772, %v771
    %v795 = vpack.c.b16 %v774, %v773
    %v796 = vpack.c.b16 %v776, %v775
    %v797 = vpack.c.b16 %v778, %v777
    %v798 = vpack.c.b16 %v780, %v779
    %v799 = vpack.c.b16 %v782, %v781
    %v800 = vpack.c.b16 %v784, %v783
    %817 = vmatpush.bf16.msra.mxu0 %v792
    %818 = vmatpush.bf16.msra.mxu0 %v791
    %819 = vmatpush.bf16.msra.mxu0 %v790
    %820 = vmatpush.bf16.msra.mxu0 %v789
    %821 = vmatpush.bf16.msra.mxu0 %v788
    %822 = vmatpush.bf16.msra.mxu0 %v787
    %823 = vmatpush.bf16.msra.mxu0 %v786
    %824 = vmatpush.bf16.msra.mxu0 %v785
    %825 = vmatmul.bf16.gmra.mxu0 %v683
    %v826 = vpop.f32.mrf.mxu0
    %v827 = vadd.f32 %v719, %v826
    %v828 = vpop.f32.mrf.mxu0
    %829 = vdwg.mxu0
    %830 = vmatpush.bf16.msra.mxu0 %v800
    %831 = vmatpush.bf16.msra.mxu0 %v799
    %832 = vmatpush.bf16.msra.mxu0 %v798
    %833 = vmatpush.bf16.msra.mxu0 %v797
    %834 = vmatpush.bf16.msra.mxu0 %v796
    %835 = vmatpush.bf16.msra.mxu0 %v795
    %836 = vmatpush.bf16.msra.mxu0 %v794
    %837 = vmatpush.bf16.msra.mxu0 %v793
    %838 = vmatmul.bf16.gmra.mxu0 %v684
    %v839 = vpop.f32.mrf.mxu0
    %v840 = vadd.f32 %v827, %v839
    %v841 = vpop.f32.mrf.mxu0
    %842 = vdwg.mxu0
    %v843 = vmax.f32 %v840, 0.0
    %v844 = vpack.c.bf16 %v843, %v843
    %v845 = vld [vmem:[#allocation6] sm:$0xff]
    %v846 = vld [vmem:[#allocation6 + $0x8] sm:$0xff]
    %v847 = vld [vmem:[#allocation6 + $0x10] sm:$0xff]
    %v848 = vld [vmem:[#allocation6 + $0x18] sm:$0xff]
    %v849 = vld [vmem:[#allocation6 + $0x20] sm:$0xff]
    %v850 = vld [vmem:[#allocation6 + $0x28] sm:$0xff]
    %v851 = vld [vmem:[#allocation6 + $0x30] sm:$0xff]
    %v852 = vld [vmem:[#allocation6 + $0x38] sm:$0xff]
    %v853 = vld [vmem:[#allocation6 + $0x40] sm:$0xff]
    %v854 = vld [vmem:[#allocation6 + $0x48] sm:$0xff]
    %v855 = vld [vmem:[#allocation6 + $0x50] sm:$0xff]
    %v856 = vld [vmem:[#allocation6 + $0x58] sm:$0xff]
    %v857 = vld [vmem:[#allocation6 + $0x60] sm:$0xff]
    %v858 = vld [vmem:[#allocation6 + $0x68] sm:$0xff]
    %v859 = vld [vmem:[#allocation6 + $0x70] sm:$0xff]
    %v860 = vld [vmem:[#allocation6 + $0x78] sm:$0xff]
    %v861 = vld [vmem:[%s10] sm:$0x3]
    %v863 = vperm.slane %v861, 0
    %v864 = vperm.slane %v861, 1
    %v883 = vunpack.c.l.b16 %v845
    %v884 = vunpack.c.h.b16 %v845
    %v885 = vunpack.c.l.b16 %v846
    %v886 = vunpack.c.h.b16 %v846
    %v887 = vunpack.c.l.b16 %v847
    %v888 = vunpack.c.h.b16 %v847
    %v889 = vunpack.c.l.b16 %v848
    %v890 = vunpack.c.h.b16 %v848
    %v891 = vunpack.c.l.b16 %v849
    %v892 = vunpack.c.h.b16 %v849
    %v893 = vunpack.c.l.b16 %v850
    %v894 = vunpack.c.h.b16 %v850
    %v895 = vunpack.c.l.b16 %v851
    %v896 = vunpack.c.h.b16 %v851
    %v897 = vunpack.c.l.b16 %v852
    %v898 = vunpack.c.h.b16 %v852
    %v899 = vunpack.c.l.b16 %v853
    %v900 = vunpack.c.h.b16 %v853
    %v901 = vunpack.c.l.b16 %v854
    %v902 = vunpack.c.h.b16 %v854
    %v903 = vunpack.c.l.b16 %v855
    %v904 = vunpack.c.h.b16 %v855
    %v905 = vunpack.c.l.b16 %v856
    %v906 = vunpack.c.h.b16 %v856
    %v907 = vunpack.c.l.b16 %v857
    %v908 = vunpack.c.h.b16 %v857
    %v909 = vunpack.c.l.b16 %v858
    %v910 = vunpack.c.h.b16 %v858
    %v911 = vunpack.c.l.b16 %v859
    %v912 = vunpack.c.h.b16 %v859
    %v913 = vunpack.c.l.b16 %v860
    %v914 = vunpack.c.h.b16 %v860
    %v915 = vpack.c.b16 %v885, %v883
    %v916 = vpack.c.b16 %v886, %v884
    %v917 = vpack.c.b16 %v889, %v887
    %v918 = vpack.c.b16 %v890, %v888
    %v919 = vpack.c.b16 %v893, %v891
    %v920 = vpack.c.b16 %v894, %v892
    %v921 = vpack.c.b16 %v897, %v895
    %v922 = vpack.c.b16 %v898, %v896
    %v923 = vpack.c.b16 %v901, %v899
    %v924 = vpack.c.b16 %v902, %v900
    %v925 = vpack.c.b16 %v905, %v903
    %v926 = vpack.c.b16 %v906, %v904
    %v927 = vpack.c.b16 %v909, %v907
    %v928 = vpack.c.b16 %v910, %v908
    %v929 = vpack.c.b16 %v913, %v911
    %v930 = vpack.c.b16 %v914, %v912
    %947 = vmatpush.bf16.msra.mxu0 %v929
    %948 = vmatpush.bf16.msra.mxu0 %v927
    %949 = vmatpush.bf16.msra.mxu0 %v925
    %950 = vmatpush.bf16.msra.mxu0 %v923
    %951 = vmatpush.bf16.msra.mxu0 %v921
    %952 = vmatpush.bf16.msra.mxu0 %v919
    %953 = vmatpush.bf16.msra.mxu0 %v917
    %954 = vmatpush.bf16.msra.mxu0 %v915
    %955 = vmatmul.bf16.gmra.mxu0 %v844
    %v956 = vpop.f32.mrf.mxu0
    %v957 = vadd.f32 %v863, %v956
    %v958 = vpop.f32.mrf.mxu0
    %959 = vdwg.mxu0
    %960 = vmatpush.bf16.msra.mxu0 %v930
    %961 = vmatpush.bf16.msra.mxu0 %v928
    %962 = vmatpush.bf16.msra.mxu0 %v926
    %963 = vmatpush.bf16.msra.mxu0 %v924
    %964 = vmatpush.bf16.msra.mxu0 %v922
    %965 = vmatpush.bf16.msra.mxu0 %v920
    %966 = vmatpush.bf16.msra.mxu0 %v918
    %967 = vmatpush.bf16.msra.mxu0 %v916
    %968 = vmatmul.bf16.gmra.mxu0 %v844
    %v969 = vpop.f32.mrf.mxu0
    %v970 = vadd.f32 %v864, %v969
    %v971 = vpop.f32.mrf.mxu0
    %972 = vdwg.mxu0
    %973 = vst [vmem:[%s12] sm:$0xff] %v957
    %974 = vst [vmem:[%s12 + $0x8] sm:$0xff] %v970
    // Predicated region
    $region58: #{simsiam_head_forward.1} parent=1 // pred_check
      _
    $region59: #{simsiam_head_forward.1} parent=1 // pred_check_branch
      %976 = sbr.rel (0) target = $region61
    $region60: #{simsiam_head_forward.1} parent=1 // pred_region
      _
    $region61: #{simsiam_head_forward.1} parent=1 // pred_fallthru
      _
    // Predicated region
    $region62: #{simsiam_head_forward.1} parent=1 // pred_check
      _
    $region63: #{simsiam_head_forward.1} parent=1 // pred_check_branch
      %978 = sbr.rel (0) target = $region65
    $region64: #{simsiam_head_forward.1} parent=1 // pred_region
      _
    $region65: #{simsiam_head_forward.1} parent=1 // pred_fallthru
      _
    // Predicated region
    $region66: #{simsiam_head_forward.1} parent=1 // pred_check
      _
    $region67: #{simsiam_head_forward.1} parent=1 // pred_check_branch
      %980 = sbr.rel (0) target = $region69
    $region68: #{simsiam_head_forward.1} parent=1 // pred_region
      _
    $region69: #{simsiam_head_forward.1} parent=1 // pred_fallthru
      _
    // Predicated region
    $region70: #{simsiam_head_forward.1} parent=1 // pred_check
      _
    $region71: #{simsiam_head_forward.1} parent=1 // pred_check_branch
      %982 = sbr.rel (0) target = $region73
    $region72: #{simsiam_head_forward.1} parent=1 // pred_region
      _
    $region73: #{simsiam_head_forward.1} parent=1 // pred_fallthru
      _
    %983 = vsyncpa [#allocation3], 1
    %984 = vsyncpa [#allocation5], 1

</llo_original>
